<compile_context>
chip_gen: v6e
topology: v6e:2x2x1
jax: 0.10.0
libtpu: 0.0.40
codegen_flags: <defaults>
</compile_context>

<pallas_src>
import jax
import jax.numpy as jnp
from jax import lax
from jax.experimental import pallas as pl
from jax.experimental.pallas import tpu as pltpu

TOKEN_BLOCK = 256   # tokens gathered per grid step
_DMA_WINDOW = 64    # max in-flight row DMAs inside one grid step


def _round_up(n: int, m: int) -> int:
    return ((n + m - 1) // m) * m


def _value_embed_kernel(ids_ref, w_ref, out_ref, rows_ref, copy_sem):
    """Gather one (token_block, D) slab of one table from HBM and emit bf16.

    ids_ref  : SMEM (T_pad,) int32             -- scalar-prefetched token ids
    w_ref    : HBM  (X, V, D) float32          -- stacked tables (pl.ANY)
    out_ref  : VMEM (token_block, D) bfloat16  -- output block for (x, t)
    rows_ref : VMEM (token_block, D) float32   -- gather landing buffer
    copy_sem : DMA semaphore shared by all row copies of this step
    """
    x = pl.program_id(0)
    t = pl.program_id(1)
    tb = out_ref.shape[0]
    base = t * tb

    def issue(j):
        idx = ids_ref[base + j]
        pltpu.make_async_copy(
            w_ref.at[x, pl.ds(idx, 1)],     # (1, D) row in HBM
            rows_ref.at[pl.ds(j, 1)],       # (1, D) row in VMEM
            copy_sem,
        ).start()

    def wait_one():
        # Same-shaped descriptor: waits for (and drains) one row's worth.
        pltpu.make_async_copy(
            w_ref.at[0, pl.ds(0, 1)],
            rows_ref.at[pl.ds(0, 1)],
            copy_sem,
        ).wait()

    window = min(_DMA_WINDOW, tb)

    def body(j, carry):
        @pl.when(j < tb)
        def _():
            issue(j)

        @pl.when(j >= window)
        def _():
            wait_one()

        return carry

    # Sliding window: keep up to `window` row DMAs in flight; after the loop
    # all `tb` copies have been issued and fully waited on.
    lax.fori_loop(0, tb + window, body, 0)

    # One vectorized cast + dense (lane-aligned) store of the whole block,
    # instead of per-row masked stores.
    out_ref[...] = rows_ref[...].astype(out_ref.dtype)


def value_embedding_pallas(ids_flat: jax.Array, weights: jax.Array,
                           *, token_block: int = TOKEN_BLOCK) -> jax.Array:
    """ids_flat: (T,) integer ids.  weights: (X, V, D) float.
    Returns (X, T, D) bfloat16 gathered embeddings."""
    X, V, D = weights.shape
    T = int(ids_flat.shape[0])

    # Lane-dense output stores: pad model_dim to a multiple of 128 if needed.
    D_pad = _round_up(D, 128)
    if D_pad != D:
        weights = jnp.pad(weights, ((0, 0), (0, 0), (0, D_pad - D)))
    weights = weights.astype(jnp.float32)
    # TODO(synk): pack the table as bf16 (2 x bf16 per uint32 along D) to halve
    # gather bytes; rows are kept f32 here so every row DMA stays 32-bit /
    # sublane aligned.

    tb = min(token_block, _round_up(max(T, 1), 16))
    T_pad = _round_up(T, tb)
    # Clamp ids: an out-of-range id would otherwise fault the bounds-checked
    # row DMA (PyTorch nn.Embedding raises; we clamp). Padded tail ids are 0.
    ids_p = jnp.clip(jnp.pad(ids_flat.astype(jnp.int32), (0, T_pad - T)),
                     0, V - 1)

    grid = (X, T_pad // tb)
    gs = pltpu.PrefetchScalarGridSpec(
        num_scalar_prefetch=1,
        grid=grid,
        in_specs=[pl.BlockSpec(memory_space=pl.ANY)],   # tables stay in HBM
        out_specs=pl.BlockSpec((None, tb, D_pad), lambda x, t, ids: (x, t, 0)),
        scratch_shapes=[
            pltpu.VMEM((tb, D_pad), jnp.float32),
            pltpu.SemaphoreType.DMA,
        ],
    )
    out = pl.pallas_call(
        _value_embed_kernel,
        out_shape=jax.ShapeDtypeStruct((X, T_pad, D_pad), jnp.bfloat16),
        grid_spec=gs,
        compiler_params=pltpu.CompilerParams(
            # Each grid step is self-contained, so both axes may be sharded
            # across TensorCores; v7x megacore balances on the token axis.
            dimension_semantics=("parallel", "parallel"),
        ),
    )(ids_p, weights)

    if T_pad != T or D_pad != D:
        out = out[:, :T, :D]
    return out


def value_embedding_forward(inputs: jax.Array, weights: jax.Array, M: int,
                            *, token_block: int = TOKEN_BLOCK):
    """Mirror of ValueEmbedding.forward.

    inputs : integer token ids, any shape (e.g. (B, S)).
    weights: (X, vocab, dim) float32 stacked embedding tables.
    Returns a python list [X bf16 embeddings, M Nones, X bf16 embeddings],
    where the trailing X entries alias the leading X entries.
    """
    X, V, D = weights.shape
    orig_shape = inputs.shape
    ids = inputs.reshape(-1)

    out = value_embedding_pallas(ids, weights, token_block=token_block)
    out = out.reshape((X,) + orig_shape + (D,))

    emb_outs = [out[i] for i in range(X)]
    return emb_outs + [None] * M + emb_outs


if __name__ == "__main__":
    # Small, deterministic config consistent with the module.
    VOCAB, DIM, X, M = 512, 128, 3, 2
    B, S = 2, 136   # T = 272 -> two 256-token blocks (exercises padding path)

    key = jax.random.PRNGKey(0)
    k_w, k_i = jax.random.split(key)
    # nn.Embedding default init: N(0, 1)
    weights = jax.random.normal(k_w, (X, VOCAB, DIM), dtype=jnp.float32)
    inputs = jax.random.randint(k_i, (B, S), 0, VOCAB, dtype=jnp.int32)

    ve = value_embedding_forward(inputs, weights, M)

    # Block on results.
    for item in ve:
        if item is not None:
            jax.block_until_ready(item)

    # Structural checks: [X embs, M Nones, X embs]
    assert len(ve) == X + M + X
    assert all(ve[X + j] is None for j in range(M))
    # Numerical check against a pure-JAX reference of the embedding lookup.
    for i in range(X):
        ref = weights[i][inputs].astype(jnp.bfloat16)
        got = ve[i]
        assert got.shape == (B, S, DIM) and got.dtype == jnp.bfloat16
        assert jnp.array_equal(got.astype(jnp.float32), ref.astype(jnp.float32))
        # trailing copies share the same arrays as the leading ones
        assert ve[X + M + i] is ve[i]

    print("KERNEL_OK")
</pallas_src>

<mosaic_0001>
module attributes {stable_mosaic.version = 11 : i64} {
  func.func @_value_embed_kernel(%arg0: i32, %arg1: i32, %arg2: memref<512xi32, #tpu.memory_space<smem>>, %arg3: memref<3x512x128xf32, #tpu.memory_space<any>>, %arg4: memref<1x256x128xbf16, #tpu.memory_space<vmem>>, %arg5: memref<256x128xf32, #tpu.memory_space<vmem>>, %arg6: memref<!tpu.dma_semaphore, #tpu.memory_space<semaphore_mem>>) attributes {dimension_semantics = [#tpu.dimension_semantics<parallel>, #tpu.dimension_semantics<parallel>], iteration_bounds = array<i64: 3, 2>, scalar_prefetch = 1 : i64, scratch_operands = 2 : i64, tpu.core_type = #tpu.core_type<tc>, window_params = [{}, {transform_indices = @transform_1, window_bounds = array<i64: 1, 256, 128>}]} {
    %c256_i32 = arith.constant 256 : i32
    %0 = arith.muli %arg1, %c256_i32 : i32
    %c0_i32 = arith.constant 0 : i32
    %c320_i32 = arith.constant 320 : i32
    %1 = arith.addi %c0_i32, %c320_i32 : i32
    %c1_i32 = arith.constant 1 : i32
    scf.for %arg7 = %c0_i32 to %1 step %c1_i32  : i32 {
      %c256_i32_5 = arith.constant 256 : i32
      %7 = arith.cmpi slt, %arg7, %c256_i32_5 : i32
      %8 = arith.extui %7 : i1 to i32
      %c0_i32_6 = arith.constant 0 : i32
      %9 = arith.cmpi ne, %8, %c0_i32_6 : i32
      scf.if %9 {
        %13 = arith.addi %0, %arg7 : i32
        %14 = arith.index_cast %13 : i32 to index
        %15 = memref.load %arg2[%14] : memref<512xi32, #tpu.memory_space<smem>>
        %c0_i32_8 = arith.constant 0 : i32
        %16 = tpu.memref_slice %arg3[%arg0, %15, %c0_i32_8] : memref<3x512x128xf32, #tpu.memory_space<any>> -> memref<1x1x128xf32, #tpu.memory_space<any>>
        %17 = tpu.memref_squeeze %16 : memref<1x1x128xf32, #tpu.memory_space<any>> -> memref<1x128xf32, #tpu.memory_space<any>>
        %c0_i32_9 = arith.constant 0 : i32
        %18 = tpu.memref_slice %arg5[%arg7, %c0_i32_9] : memref<256x128xf32, #tpu.memory_space<vmem>> -> memref<1x128xf32, #tpu.memory_space<vmem>>
        tpu.enqueue_dma source(%17 : memref<1x128xf32, #tpu.memory_space<any>>) target(%18 : memref<1x128xf32, #tpu.memory_space<vmem>>) target_semaphore(%arg6 : memref<!tpu.dma_semaphore, #tpu.memory_space<semaphore_mem>>)
      } else {
      }
      %c64_i32 = arith.constant 64 : i32
      %10 = arith.cmpi sge, %arg7, %c64_i32 : i32
      %11 = arith.extui %10 : i1 to i32
      %c0_i32_7 = arith.constant 0 : i32
      %12 = arith.cmpi ne, %11, %c0_i32_7 : i32
      scf.if %12 {
        %c0_i32_8 = arith.constant 0 : i32
        %c0_i32_9 = arith.constant 0 : i32
        %c0_i32_10 = arith.constant 0 : i32
        %13 = tpu.memref_slice %arg3[%c0_i32_8, %c0_i32_9, %c0_i32_10] : memref<3x512x128xf32, #tpu.memory_space<any>> -> memref<1x1x128xf32, #tpu.memory_space<any>>
        %14 = tpu.memref_squeeze %13 : memref<1x1x128xf32, #tpu.memory_space<any>> -> memref<1x128xf32, #tpu.memory_space<any>>
        %c0_i32_11 = arith.constant 0 : i32
        %c0_i32_12 = arith.constant 0 : i32
        %15 = tpu.memref_slice %arg5[%c0_i32_11, %c0_i32_12] : memref<256x128xf32, #tpu.memory_space<vmem>> -> memref<1x128xf32, #tpu.memory_space<vmem>>
        tpu.wait_dma2 semaphore(%arg6 : memref<!tpu.dma_semaphore, #tpu.memory_space<semaphore_mem>>) src(%14 : memref<1x128xf32, #tpu.memory_space<any>>) dst(%15 : memref<1x128xf32, #tpu.memory_space<vmem>>)
      } else {
      }
    }
    %c320_i32_0 = arith.constant 320 : i32
    %c0 = arith.constant 0 : index
    %c0_1 = arith.constant 0 : index
    %2 = vector.load %arg5[%c0, %c0_1] : memref<256x128xf32, #tpu.memory_space<vmem>>, vector<256x128xf32>
    %3 = arith.truncf %2 : vector<256x128xf32> to vector<256x128xbf16>
    %c0_2 = arith.constant 0 : index
    %c0_3 = arith.constant 0 : index
    %c0_4 = arith.constant 0 : index
    %4 = vector.load %arg4[%c0_2, %c0_3, %c0_4] : memref<1x256x128xbf16, #tpu.memory_space<vmem>>, vector<1x256x128xbf16>
    %5 = vector.shape_cast %4 : vector<1x256x128xbf16> to vector<256x128xbf16>
    %6 = vector.shape_cast %3 : vector<256x128xbf16> to vector<1x256x128xbf16>
    tpu.vector_store %arg4[%c0_2, %c0_3, %c0_4], %6 {strides = array<i32>} : memref<1x256x128xbf16, #tpu.memory_space<vmem>>, vector<1x256x128xbf16>,
    return
  }
  func.func @transform_1(%arg0: i32, %arg1: i32, %arg2: memref<512xi32, #tpu.memory_space<smem>>) -> (i32, i32, i32) {
    %c0_i32 = arith.constant 0 : i32
    %c0_i32_0 = arith.constant 0 : i32
    return %arg0, %arg1, %c0_i32 : i32, i32, i32
  }
}

</mosaic_0001>

<llo_original>
// kernel: tpu_custom_call.1
$region0: #{tpu_custom_call.1}
  #allocation0 [shape = 'u32[]', space=smem, size = 0x4, offset = 0x4, fixed_abs, tag = 'smem constant byte address 0x4 - core index']
  #allocation1 [shape = 'u32[144,128]{1,0:T(1,128)}', space=vmem, size = 0x12000, scoped, tag = 'internal scratch']
  #allocation2 [shape = 'f32[256,128]{1,0:T(8,128)}', space=vmem, size = 0x20000, scoped, tag = 'scratch operand']
  #allocation3 [shape = 's32[1]{0}', space=sflag, size = 0x4, scoped, tag = 'scratch operand']
  #allocation4 [shape = 's32[1]{0}', space=sflag, size = 0x4, scoped, tag = 'scoped memory for tpu_custom_call.1']
  #allocation5 [shape = 'u8[2048]{0}', space=smem, size = 0x800, scoped, tag = 'prefetched SMEM operand 0']
  #allocation8 [shape = 's32[]', space=sflag, size = 0x4, offset = 0, fixed_abs, tag = 'sflag constant byte address 0x0 - dummy sync flag']
  #allocation9 [shape = 's32[]', space=sflag, size = 0x4, offset = 0, fixed_abs, tag = 'sflag constant byte address 0x0 - dummy sync flag']
  #allocation10 [shape = 'u32[]', space=smem, size = 0x4, offset = 0x44, fixed_abs, tag = 'smem constant byte address 0x44 - assertion arg 0']
  #allocation11 [shape = 'u32[]', space=smem, size = 0x4, offset = 0x48, fixed_abs, tag = 'smem constant byte address 0x48 - assertion arg 1']
  %s0 = inlined_call_operand.hbm [shape: s32[512], index: 0, kind: input, shape index: {}]
  %s1 = inlined_call_operand.hbm [shape: f32[3,512,128], index: 1, kind: input, shape index: {}]
  %s2 = inlined_call_operand.hbm [shape: bf16[3,512,128], index: 2, kind: output, shape index: {}]
  %s3 = sld [smem:[#allocation0]]
  $region44: #{tpu_custom_call.1} parent=0
    _
  %s5 = ssub.s32 1, %s3
  %s6 = scalar_select 0, %s5, %s3
  %8 = dma.hbm_to_smem %s0, 64, [#allocation5], [#allocation4]
  %9 = dma.done [#allocation4], 64
  %10 = sfence
  $region1: #{tpu_custom_call.1} parent=0
    #allocation6 [shape = 'u8[131072]{0}', space=vmem, size = 0x20000, scoped, tag = 'output window, operand 0']
    #allocation7 [shape = 's32[2]{0}', space=sflag, size = 0x8, scoped, tag = 'scoped memory for tpu_custom_call.1']
    %11 = vsyncpa [#allocation7], 0
    %s12 = scalar_lea.sflag [#allocation7], 1
    %13 = vsyncpa %s12, 0
    loop: start=0, step=1, limit=7
    $region2: #{tpu_custom_call.1} parent=1 // loop_pre_header
      _
    $region3: #{tpu_custom_call.1} parent=1 // loop_header
      %s15 = sphi 0, %s19
      %p16 = scmp.ge.s32.totalorder %s15, 7
      %s21 = sphi 0, %s31
      %s22 = sphi 0, %s27
      %s23 = sphi 0, %s21
      %s24 = sphi 0, %s22
      %s36 = sphi 0, %s38
      %s39 = sphi 0, %s36
      %s49 = sphi 0, %s39
    $region4: #{tpu_custom_call.1} parent=1 // loop_header_branch
      %18 = sbr.rel (%p16) target = $region8
    $region5: #{tpu_custom_call.1} parent=1 // loop_body
      %s20 = ssub.s32 %s15, 1
      %s25 = sadd.s32 1, %s22
      %p26 = scmp.ge.s32.totalorder %s25, 2
      %s27 = scalar_select %p26, 0, %s25
      %s28 = sadd.s32 1, %s21
      %s29 = scalar_select %p26, %s28, %s21
      %p30 = scmp.ge.s32.totalorder %s29, 3
      %s31 = scalar_select %p30, 0, %s29
      %s32 = ssub.s32 %s21, %s31
      %s33 = ssub.s32 %s22, %s27
      %s34 = sor.u32 %s32, %s33
      %p35 = scmp.eq.s32.totalorder %s34, 0
      %s37 = sadd.s32 %s36, 1
      %s38 = scalar_select %p35, %s36, %s37
      %p40 = pneg %p35
      %p41 = scmp.eq.s32.totalorder %s15, 5
      %p42 = por %p40, %p41
      %p43 = scmp.ne.s32.totalorder %s36, %s39
      %p44 = scmp.eq.s32.totalorder %s15, 0
      %p45 = por %p43, %p44
      %p46 = scmp.ne.s32.totalorder %s36, %s39
      %p47 = scmp.eq.s32.totalorder %s20, 5
      %p48 = por %p46, %p47
      %p50 = scmp.ne.s32.totalorder %s39, %s49
      %p51 = scmp.eq.s32.totalorder %s20, 0
      %p52 = por %p50, %p51
      %p53 = scmp.lt.s32.totalorder %s15, 6
      // Predicated region
      $region9: #{tpu_custom_call.1} parent=5 // pred_check
        %p54 = pneg %p53
      $region10: #{tpu_custom_call.1} parent=5 // pred_check_branch
        %56 = sbr.rel (%p54) target = $region12
      $region11: #{tpu_custom_call.1} parent=5 // pred_region
        %p57 = pneg %p45
        %p58 = pneg %p42
        %s59 = sand.u32 %s36, 1
        %s60 = scalar_lea.sflag [#allocation7], %s59
        %s61 = sand.u32 %s36, 1
        %s62 = smul.addr %s61, 128
        %s63 = scalar_lea.vmem [#allocation6], %s62
        %s64 = smul.u32 32, %s22
        %s65 = smul.u32 %s22, 256
        loop: start=0, step=1, limit=320
        $region13: #{tpu_custom_call.1} parent=11 // loop_pre_header
          _
        $region14: #{tpu_custom_call.1} parent=11 // loop_header
          %s67 = sphi 0, %s71
          %p68 = scmp.ge.s32.totalorder %s67, 320
        $region15: #{tpu_custom_call.1} parent=11 // loop_header_branch
          %70 = sbr.rel (%p68) target = $region19
        $region16: #{tpu_custom_call.1} parent=11 // loop_body
          %p72 = scmp.lt.s32.totalorder %s67, 256
          // Predicated region
          $region20: #{tpu_custom_call.1} parent=16 // pred_check
            %p73 = pneg %p72
          $region21: #{tpu_custom_call.1} parent=16 // pred_check_branch
            %75 = sbr.rel (%p73) target = $region23
          $region22: #{tpu_custom_call.1} parent=16 // pred_region
            %s76 = sadd.s32 %s65, %s67
            %s77 = sld [smem:[#allocation5 + %s76]]
            %s78 = smul.u32 %s21, 512
            %s79 = sadd.s32 %s77, %s78
            %s80 = smul.addr %s79, 16
            %s81 = scalar_lea.hbm %s1, %s80
            %s82 = scalar_lea.vmem [#allocation2], %s67
            // Predicated region
            $region24: #{tpu_custom_call.1} parent=22 // pred_check
              _
            $region25: #{tpu_custom_call.1} parent=22 // pred_check_branch
              %84 = sbr.rel target = $region27
            $region26: #{tpu_custom_call.1} parent=22 // pred_region
              %85 = sst [smem:[#allocation10]] [#allocation9]
              %86 = sst [smem:[#allocation11]] [#allocation8]
            $region27: #{tpu_custom_call.1} parent=22 // pred_fallthru
              _
            %88 = shalt.err (0)
            %s90 = sshll.u32 %s82, 4
            %s91 = int_to_ptr.vmem [resolvable:$true] %s90
            %93 = dma.hbm_to_vmem [thread:$0]  %s81, 16, %s91, [#allocation3]
          $region23: #{tpu_custom_call.1} parent=16 // pred_fallthru
            _
          %p94 = scmp.ge.s32.totalorder %s67, 64
          // Predicated region
          $region28: #{tpu_custom_call.1} parent=16 // pred_check
            %p95 = pneg %p94
          $region29: #{tpu_custom_call.1} parent=16 // pred_check_branch
            %97 = sbr.rel (%p95) target = $region31
          $region30: #{tpu_custom_call.1} parent=16 // pred_region
            %s98 = smul.u32 1, 1
            %s99 = sshll.u32 %s98, 4
            %100 = dma.done [#allocation3], %s99
          $region31: #{tpu_custom_call.1} parent=16 // pred_fallthru
            _
        $region17: #{tpu_custom_call.1} parent=11 // loop_footer
          %s71 = sadd.s32 1, %s67
        $region18: #{tpu_custom_call.1} parent=11 // loop_footer_branch
          %66 = sbr.rel target = $region14
        $region19: #{tpu_custom_call.1} parent=11 // loop_exit
          _
        %v101 = vld [vmem:[#allocation2] sm:$0xff]
        %v102 = vld [vmem:[#allocation2 + $0x8] sm:$0xff]
        %v103 = vld [vmem:[#allocation2 + $0x10] sm:$0xff]
        %v104 = vld [vmem:[#allocation2 + $0x18] sm:$0xff]
        %v105 = vld [vmem:[#allocation2 + $0x20] sm:$0xff]
        %v106 = vld [vmem:[#allocation2 + $0x28] sm:$0xff]
        %v107 = vld [vmem:[#allocation2 + $0x30] sm:$0xff]
        %v108 = vld [vmem:[#allocation2 + $0x38] sm:$0xff]
        %v109 = vld [vmem:[#allocation2 + $0x40] sm:$0xff]
        %v110 = vld [vmem:[#allocation2 + $0x48] sm:$0xff]
        %v111 = vld [vmem:[#allocation2 + $0x50] sm:$0xff]
        %v112 = vld [vmem:[#allocation2 + $0x58] sm:$0xff]
        %v113 = vld [vmem:[#allocation2 + $0x60] sm:$0xff]
        %v114 = vld [vmem:[#allocation2 + $0x68] sm:$0xff]
        %v115 = vld [vmem:[#allocation2 + $0x70] sm:$0xff]
        %v116 = vld [vmem:[#allocation2 + $0x78] sm:$0xff]
        %v117 = vld [vmem:[#allocation2 + $0x80] sm:$0xff]
        %v118 = vld [vmem:[#allocation2 + $0x88] sm:$0xff]
        %v119 = vld [vmem:[#allocation2 + $0x90] sm:$0xff]
        %v120 = vld [vmem:[#allocation2 + $0x98] sm:$0xff]
        %v121 = vld [vmem:[#allocation2 + $0xa0] sm:$0xff]
        %v122 = vld [vmem:[#allocation2 + $0xa8] sm:$0xff]
        %v123 = vld [vmem:[#allocation2 + $0xb0] sm:$0xff]
        %v124 = vld [vmem:[#allocation2 + $0xb8] sm:$0xff]
        %v125 = vld [vmem:[#allocation2 + $0xc0] sm:$0xff]
        %v126 = vld [vmem:[#allocation2 + $0xc8] sm:$0xff]
        %v127 = vld [vmem:[#allocation2 + $0xd0] sm:$0xff]
        %v128 = vld [vmem:[#allocation2 + $0xd8] sm:$0xff]
        %v129 = vld [vmem:[#allocation2 + $0xe0] sm:$0xff]
        %v130 = vld [vmem:[#allocation2 + $0xe8] sm:$0xff]
        %v131 = vld [vmem:[#allocation2 + $0xf0] sm:$0xff]
        %v132 = vld [vmem:[#allocation2 + $0xf8] sm:$0xff]
        %v133 = vpack.c.bf16 %v102, %v101
        %v134 = vpack.c.bf16 %v104, %v103
        %v135 = vpack.c.bf16 %v106, %v105
        %v136 = vpack.c.bf16 %v108, %v107
        %v137 = vpack.c.bf16 %v110, %v109
        %v138 = vpack.c.bf16 %v112, %v111
        %v139 = vpack.c.bf16 %v114, %v113
        %v140 = vpack.c.bf16 %v116, %v115
        %v141 = vpack.c.bf16 %v118, %v117
        %v142 = vpack.c.bf16 %v120, %v119
        %v143 = vpack.c.bf16 %v122, %v121
        %v144 = vpack.c.bf16 %v124, %v123
        %v145 = vpack.c.bf16 %v126, %v125
        %v146 = vpack.c.bf16 %v128, %v127
        %v147 = vpack.c.bf16 %v130, %v129
        %v148 = vpack.c.bf16 %v132, %v131
        %v165 = vunpack.c.l.b16 %v133
        %v166 = vunpack.c.h.b16 %v133
        %v167 = vunpack.c.l.b16 %v134
        %v168 = vunpack.c.h.b16 %v134
        %v169 = vunpack.c.l.b16 %v135
        %v170 = vunpack.c.h.b16 %v135
        %v171 = vunpack.c.l.b16 %v136
        %v172 = vunpack.c.h.b16 %v136
        %v173 = vunpack.c.l.b16 %v137
        %v174 = vunpack.c.h.b16 %v137
        %v175 = vunpack.c.l.b16 %v138
        %v176 = vunpack.c.h.b16 %v138
        %v177 = vunpack.c.l.b16 %v139
        %v178 = vunpack.c.h.b16 %v139
        %v179 = vunpack.c.l.b16 %v140
        %v180 = vunpack.c.h.b16 %v140
        %v181 = vunpack.c.l.b16 %v141
        %v182 = vunpack.c.h.b16 %v141
        %v183 = vunpack.c.l.b16 %v142
        %v184 = vunpack.c.h.b16 %v142
        %v185 = vunpack.c.l.b16 %v143
        %v186 = vunpack.c.h.b16 %v143
        %v187 = vunpack.c.l.b16 %v144
        %v188 = vunpack.c.h.b16 %v144
        %v189 = vunpack.c.l.b16 %v145
        %v190 = vunpack.c.h.b16 %v145
        %v191 = vunpack.c.l.b16 %v146
        %v192 = vunpack.c.h.b16 %v146
        %v193 = vunpack.c.l.b16 %v147
        %v194 = vunpack.c.h.b16 %v147
        %v195 = vunpack.c.l.b16 %v148
        %v196 = vunpack.c.h.b16 %v148
        %v197 = vpack.c.b16 %v165, %v165
        %v198 = vpack.c.b16 %v166, %v166
        %v199 = vpack.c.b16 %v167, %v167
        %v200 = vpack.c.b16 %v168, %v168
        %v201 = vpack.c.b16 %v169, %v169
        %v202 = vpack.c.b16 %v170, %v170
        %v203 = vpack.c.b16 %v171, %v171
        %v204 = vpack.c.b16 %v172, %v172
        %v205 = vpack.c.b16 %v173, %v173
        %v206 = vpack.c.b16 %v174, %v174
        %v207 = vpack.c.b16 %v175, %v175
        %v208 = vpack.c.b16 %v176, %v176
        %v209 = vpack.c.b16 %v177, %v177
        %v210 = vpack.c.b16 %v178, %v178
        %v211 = vpack.c.b16 %v179, %v179
        %v212 = vpack.c.b16 %v180, %v180
        %v213 = vpack.c.b16 %v181, %v181
        %v214 = vpack.c.b16 %v182, %v182
        %v215 = vpack.c.b16 %v183, %v183
        %v216 = vpack.c.b16 %v184, %v184
        %v217 = vpack.c.b16 %v185, %v185
        %v218 = vpack.c.b16 %v186, %v186
        %v219 = vpack.c.b16 %v187, %v187
        %v220 = vpack.c.b16 %v188, %v188
        %v221 = vpack.c.b16 %v189, %v189
        %v222 = vpack.c.b16 %v190, %v190
        %v223 = vpack.c.b16 %v191, %v191
        %v224 = vpack.c.b16 %v192, %v192
        %v225 = vpack.c.b16 %v193, %v193
        %v226 = vpack.c.b16 %v194, %v194
        %v227 = vpack.c.b16 %v195, %v195
        %v228 = vpack.c.b16 %v196, %v196
        %261 = vst [vmem:[%s63] sm:$0xf] %v197
        %262 = vst [vmem:[%s63 + $0x4] sm:$0xf] %v198
        %263 = vst [vmem:[%s63 + $0x8] sm:$0xf] %v199
        %264 = vst [vmem:[%s63 + $0xc] sm:$0xf] %v200
        %265 = vst [vmem:[%s63 + $0x10] sm:$0xf] %v201
        %266 = vst [vmem:[%s63 + $0x14] sm:$0xf] %v202
        %267 = vst [vmem:[%s63 + $0x18] sm:$0xf] %v203
        %268 = vst [vmem:[%s63 + $0x1c] sm:$0xf] %v204
        %269 = vst [vmem:[%s63 + $0x20] sm:$0xf] %v205
        %270 = vst [vmem:[%s63 + $0x24] sm:$0xf] %v206
        %271 = vst [vmem:[%s63 + $0x28] sm:$0xf] %v207
        %272 = vst [vmem:[%s63 + $0x2c] sm:$0xf] %v208
        %273 = vst [vmem:[%s63 + $0x30] sm:$0xf] %v209
        %274 = vst [vmem:[%s63 + $0x34] sm:$0xf] %v210
        %275 = vst [vmem:[%s63 + $0x38] sm:$0xf] %v211
        %276 = vst [vmem:[%s63 + $0x3c] sm:$0xf] %v212
        %277 = vst [vmem:[%s63 + $0x40] sm:$0xf] %v213
        %278 = vst [vmem:[%s63 + $0x44] sm:$0xf] %v214
        %279 = vst [vmem:[%s63 + $0x48] sm:$0xf] %v215
        %280 = vst [vmem:[%s63 + $0x4c] sm:$0xf] %v216
        %281 = vst [vmem:[%s63 + $0x50] sm:$0xf] %v217
        %282 = vst [vmem:[%s63 + $0x54] sm:$0xf] %v218
        %283 = vst [vmem:[%s63 + $0x58] sm:$0xf] %v219
        %284 = vst [vmem:[%s63 + $0x5c] sm:$0xf] %v220
        %285 = vst [vmem:[%s63 + $0x60] sm:$0xf] %v221
        %286 = vst [vmem:[%s63 + $0x64] sm:$0xf] %v222
        %287 = vst [vmem:[%s63 + $0x68] sm:$0xf] %v223
        %288 = vst [vmem:[%s63 + $0x6c] sm:$0xf] %v224
        %289 = vst [vmem:[%s63 + $0x70] sm:$0xf] %v225
        %290 = vst [vmem:[%s63 + $0x74] sm:$0xf] %v226
        %291 = vst [vmem:[%s63 + $0x78] sm:$0xf] %v227
        %292 = vst [vmem:[%s63 + $0x7c] sm:$0xf] %v228
        %s293 = sand.u32 %s36, 1
        %s294 = scalar_lea.sflag [#allocation7], %s293
        %s295 = sand.u32 %s36, 1
        %s296 = smul.addr %s295, 128
        %s297 = scalar_lea.vmem [#allocation6], %s296
        // Predicated region
        $region32: #{tpu_custom_call.1} parent=11 // pred_check
          %p298 = pneg %p42
        $region33: #{tpu_custom_call.1} parent=11 // pred_check_branch
          %300 = sbr.rel (%p298) target = $region35
        $region34: #{tpu_custom_call.1} parent=11 // pred_region
          %s301 = smul.u32 32, %s22
          %s303 = ssub.s32 2048, 2048
          %304 = vsyncadd %s294, %s303
          %s305 = smul.addr %s21, 64
          %s306 = sadd.s32 %s301, %s305
          %s307 = smul.addr %s306, 64
          %s308 = scalar_lea.hbm %s2, %s307
          %s309 = sshll.u32 %s297, 4
          %s310 = int_to_ptr.vmem [resolvable:$true] %s309
          %315 = dma.vmem_to_hbm [thread:$0]  %s310, 2048, %s308, %s294, 64, 64, 4
        $region35: #{tpu_custom_call.1} parent=11 // pred_fallthru
          _
      $region12: #{tpu_custom_call.1} parent=5 // pred_fallthru
        _
      %p316 = scmp.le.s32.totalorder 1, %s15
      // Predicated region
      $region36: #{tpu_custom_call.1} parent=5 // pred_check
        %p317 = pneg %p316
      $region37: #{tpu_custom_call.1} parent=5 // pred_check_branch
        %319 = sbr.rel (%p317) target = $region39
      $region38: #{tpu_custom_call.1} parent=5 // pred_region
        %s320 = ssub.s32 %s15, 1
        // Predicated region
        $region40: #{tpu_custom_call.1} parent=38 // pred_check
          %p321 = pneg %p48
        $region41: #{tpu_custom_call.1} parent=38 // pred_check_branch
          %323 = sbr.rel (%p321) target = $region43
        $region42: #{tpu_custom_call.1} parent=38 // pred_region
          %s324 = sand.u32 %s39, 1
          %s325 = scalar_lea.sflag [#allocation7], %s324
          %s326 = sand.u32 %s39, 1
          %s327 = smul.addr %s326, 128
          %s328 = scalar_lea.vmem [#allocation6], %s327
          %329 = dma.done %s325, 2048
        $region43: #{tpu_custom_call.1} parent=38 // pred_fallthru
          _
      $region39: #{tpu_custom_call.1} parent=5 // pred_fallthru
        _
    $region6: #{tpu_custom_call.1} parent=1 // loop_footer
      %s19 = sadd.s32 1, %s15
    $region7: #{tpu_custom_call.1} parent=1 // loop_footer_branch
      %14 = sbr.rel target = $region3
    $region8: #{tpu_custom_call.1} parent=1 // loop_exit
      _
    %330 = vsyncpa [#allocation7], 1
    %s331 = scalar_lea.sflag [#allocation7], 1
    %332 = vsyncpa %s331, 1
  %333 = vsyncmov [#allocation3]
  %s334 = vpop.sfrf %333
  %p335 = scmp.eq.s32.totalorder %s334, 0
  %p336 = pneg %p335
  %338 = shalt.err (%p336)

</llo_original>
